<compile_context>
chip_gen: v5e
topology: v5e:2x2
jax: 0.10.0
libtpu: 0.0.40
codegen_flags: <defaults>
</compile_context>

<pallas_src>
import jax
import jax.numpy as jnp
from jax.experimental import pallas as pl
from jax.experimental.pallas import tpu as pltpu


def _copy_kernel(x_ref, o_ref):
    # Whole-tile VMEM load/store; Pallas pipelines the HBM<->VMEM DMAs
    # (prefetch tile i+1, write back tile i-1, while copying tile i).
    o_ref[...] = x_ref[...]


def _sublane_unit(dtype):
    """Packed sublane count: 8 for 32-bit, 16 for 16-bit, 32 for 8-bit."""
    itemsize = jnp.dtype(dtype).itemsize
    return max(8, 32 // max(1, itemsize))


def _choose_layout(n_elems, dtype):
    """Pick a lane-dense 2-D layout and row-tile size for the copy.

    Returns (lane, rows, tile_rows) or None if no pad-free layout exists.
    """
    candidates = (2048, 1024, 512, 256, 128)

    # Prefer the widest lane that still leaves >= 8 rows (unmasked stores,
    # sane sublane layout); otherwise take the widest pad-free lane.
    lane = None
    for cand in candidates:
        if n_elems % cand == 0 and n_elems // cand >= 8:
            lane = cand
            break
    if lane is None:
        for cand in candidates:
            if n_elems % cand == 0:
                lane = cand
                break
    if lane is None:
        return None

    rows = n_elems // lane
    itemsize = jnp.dtype(dtype).itemsize
    sub = _sublane_unit(dtype)

    # Target ~2 MiB per tile: in + out double-buffered => ~8 MiB pipelined
    # VMEM, comfortably under v5e's 16 MiB scoped default and far under
    # v6e/v7x budgets, while already sitting near the HBM roofline.
    target_rows = max(sub, (2 << 20) // (lane * itemsize))
    target_rows = (target_rows // sub) * sub

    if rows <= target_rows:
        return lane, rows, rows  # single full-extent block (always legal)

    # Prefer a sublane-aligned tile_rows that divides rows (no masked tail).
    tile_rows = 0
    t = target_rows
    while t >= sub:
        if rows % t == 0:
            tile_rows = t
            break
        t -= sub
    if tile_rows == 0:
        tile_rows = target_rows  # accept the masked tail knowingly
    return lane, rows, tile_rows


def _pallas_identity_copy(x):
    """Materialized identity copy of x via a tiled, lane-dense Pallas kernel."""
    layout = _choose_layout(x.size, x.dtype)
    if layout is None:
        # Ragged element count (not a multiple of 128): a pad/copy/slice
        # round-trip would double HBM traffic for zero benefit.
        # TODO(synk): no pad-free lane-dense layout; fall back to plain copy.
        return jnp.copy(x)

    lane, rows, tile_rows = layout
    x2d = jnp.reshape(x, (rows, lane))  # pad-free, lane-dense slab

    itemsize = jnp.dtype(x.dtype).itemsize
    tile_bytes = tile_rows * lane * itemsize
    # in + out specs are each double-buffered => ~4 * tile_bytes, plus slack.
    vmem_limit = min(32 << 20, max(16 << 20, 4 * tile_bytes + (4 << 20)))

    out2d = pl.pallas_call(
        _copy_kernel,
        out_shape=jax.ShapeDtypeStruct((rows, lane), x2d.dtype),
        grid=(pl.cdiv(rows, tile_rows),),
        in_specs=[pl.BlockSpec((tile_rows, lane), lambda i: (i, 0))],
        out_specs=pl.BlockSpec((tile_rows, lane), lambda i: (i, 0)),
        compiler_params=pltpu.CompilerParams(
            dimension_semantics=("arbitrary",),
            vmem_limit_bytes=vmem_limit,
        ),
    )(x2d)

    return jnp.reshape(out2d, x.shape)


def base_network_forward(x, materialize=False):
    """Identity forward for the (abstract) BaseNetwork.

    Default path returns x untouched (0 bytes of HBM traffic — the cheapest
    correct identity).  Set materialize=True to force a fresh buffer via the
    Pallas tiled copy (e.g. if a caller must not alias the input).
    """
    if not materialize:
        return x
    return _pallas_identity_copy(x)


if __name__ == "__main__":
    key = jax.random.PRNGKey(0)
    # NCHW input, small shapes: batch=2, channels=4, spatial=16x16.
    x = jax.random.normal(key, (2, 4, 16, 16), dtype=jnp.float32)

    # Default (elided) identity path.
    y_fast = base_network_forward(x)
    jax.block_until_ready(y_fast)
    assert y_fast.shape == x.shape and y_fast.dtype == x.dtype
    assert bool(jnp.allclose(y_fast, x))

    # Materialized Pallas copy path (exercises the kernel once).
    y = base_network_forward(x, materialize=True)
    jax.block_until_ready(y)
    assert y.shape == x.shape
    assert y.dtype == x.dtype
    assert bool(jnp.allclose(y, x))

    print("KERNEL_OK")
</pallas_src>

<mosaic_0001>
module attributes {stable_mosaic.version = 11 : i64} {
  func.func @_copy_kernel(%arg0: i32, %arg1: memref<8x256xf32, #tpu.memory_space<vmem>>, %arg2: memref<8x256xf32, #tpu.memory_space<vmem>>) attributes {dimension_semantics = [#tpu.dimension_semantics<arbitrary>], iteration_bounds = array<i64: 1>, scalar_prefetch = 0 : i64, scratch_operands = 0 : i64, tpu.core_type = #tpu.core_type<tc>, window_params = [{transform_indices = @transform_0, window_bounds = array<i64: 8, 256>}, {transform_indices = @transform_1, window_bounds = array<i64: 8, 256>}]} {
    %c0 = arith.constant 0 : index
    %c0_0 = arith.constant 0 : index
    %0 = vector.load %arg1[%c0, %c0_0] : memref<8x256xf32, #tpu.memory_space<vmem>>, vector<8x256xf32>
    %c0_1 = arith.constant 0 : index
    %c0_2 = arith.constant 0 : index
    %1 = vector.load %arg2[%c0_1, %c0_2] : memref<8x256xf32, #tpu.memory_space<vmem>>, vector<8x256xf32>
    tpu.vector_store %arg2[%c0_1, %c0_2], %0 {strides = array<i32>} : memref<8x256xf32, #tpu.memory_space<vmem>>, vector<8x256xf32>,
    return
  }
  func.func @transform_0(%arg0: i32) -> (i32, i32) {
    %c0_i32 = arith.constant 0 : i32
    %c0_i32_0 = arith.constant 0 : i32
    return %arg0, %c0_i32 : i32, i32
  }
  func.func @transform_1(%arg0: i32) -> (i32, i32) {
    %c0_i32 = arith.constant 0 : i32
    %c0_i32_0 = arith.constant 0 : i32
    return %arg0, %c0_i32 : i32, i32
  }
}

</mosaic_0001>

<llo_original>
// kernel: tpu_custom_call.1
$region0: #{tpu_custom_call.1}
  #allocation0 [shape = 'u32[]', space=smem, size = 0x4, offset = 0x4, fixed_abs, tag = 'smem constant byte address 0x4 - core index']
  #allocation1 [shape = 'u32[72,128]{1,0:T(1,128)}', space=vmem, size = 0x9000, scoped, tag = 'internal scratch']
  %s0 = inlined_call_operand.hbm [shape: f32[8,256], index: 0, kind: input, shape index: {}]
  %s1 = inlined_call_operand.hbm [shape: f32[8,256], index: 1, kind: output, shape index: {}]
  %s2 = sld [smem:[#allocation0]]
  $region18: #{tpu_custom_call.1} parent=0
    _
  %s4 = ssub.s32 1, %s2
  %s5 = scalar_select 0, %s4, %s2
  $region1: #{tpu_custom_call.1} parent=0
    #allocation2 [shape = 'u8[8192]{0}', space=vmem, size = 0x2000, scoped, tag = 'input window, operand 0, single buffered']
    #allocation3 [shape = 's32[1]{0}', space=sflag, size = 0x4, scoped, tag = 'scoped memory for tpu_custom_call.1']
    #allocation4 [shape = 's32[1]{0}', space=sflag, size = 0x4, scoped, tag = 'scoped memory for tpu_custom_call.1']
    #allocation5 [shape = 'u8[8192]{0}', space=vmem, size = 0x2000, scoped, tag = 'output window, operand 0, single buffered']
    %6 = vsyncpa [#allocation3], 0
    %7 = vsyncpa [#allocation4], 0
    // Predicated region
    $region2: #{tpu_custom_call.1} parent=1 // pred_check
      _
    $region3: #{tpu_custom_call.1} parent=1 // pred_check_branch
      %9 = sbr.rel (0) target = $region5
    $region4: #{tpu_custom_call.1} parent=1 // pred_region
      %11 = vsyncadd [#allocation3], 0
      %s13 = sshll.u32 %s0, 4
      %s14 = int_to_ptr.hbm [resolvable:$true] %s13
      %s15 = sshll.u32 [#allocation2], 4
      %s16 = int_to_ptr.vmem [resolvable:$true] %s15
      %18 = dma.hbm_to_vmem [thread:$0]  %s14, 256, %s16, [#allocation3]
    $region5: #{tpu_custom_call.1} parent=1 // pred_fallthru
      _
    // Predicated region
    $region6: #{tpu_custom_call.1} parent=1 // pred_check
      _
    $region7: #{tpu_custom_call.1} parent=1 // pred_check_branch
      %20 = sbr.rel (0) target = $region9
    $region8: #{tpu_custom_call.1} parent=1 // pred_region
      %22 = dma.done [#allocation3], 256
    $region9: #{tpu_custom_call.1} parent=1 // pred_fallthru
      _
    %v23 = vld [vmem:[#allocation2] sm:$0xff]
    %v24 = vld [vmem:[#allocation2 + $0x8] sm:$0xff]
    %25 = vst [vmem:[#allocation5] sm:$0xff] %v23
    %26 = vst [vmem:[#allocation5 + $0x8] sm:$0xff] %v24
    // Predicated region
    $region10: #{tpu_custom_call.1} parent=1 // pred_check
      _
    $region11: #{tpu_custom_call.1} parent=1 // pred_check_branch
      %28 = sbr.rel (0) target = $region13
    $region12: #{tpu_custom_call.1} parent=1 // pred_region
      %30 = vsyncadd [#allocation4], 0
      %s32 = sshll.u32 [#allocation5], 4
      %s33 = int_to_ptr.vmem [resolvable:$true] %s32
      %s34 = sshll.u32 %s1, 4
      %s35 = int_to_ptr.hbm [resolvable:$true] %s34
      %37 = dma.vmem_to_hbm [thread:$0]  %s33, 256, %s35, [#allocation4]
    $region13: #{tpu_custom_call.1} parent=1 // pred_fallthru
      _
    // Predicated region
    $region14: #{tpu_custom_call.1} parent=1 // pred_check
      _
    $region15: #{tpu_custom_call.1} parent=1 // pred_check_branch
      %39 = sbr.rel (0) target = $region17
    $region16: #{tpu_custom_call.1} parent=1 // pred_region
      %41 = dma.done [#allocation4], 256
    $region17: #{tpu_custom_call.1} parent=1 // pred_fallthru
      _
    %42 = vsyncpa [#allocation3], 1
    %43 = vsyncpa [#allocation4], 1

</llo_original>
